<compile_context>
chip_gen: v7x
topology: tpu7x:2x2x1
jax: 0.10.0
libtpu: 0.0.40
codegen_flags: <defaults>
</compile_context>

<pallas_src>
import jax
import jax.numpy as jnp
from jax.experimental import pallas as pl
from jax.experimental.pallas import tpu as pltpu


def _transpose_kernel(x_ref, o_ref):
    # x_ref: (c_tile, hw_tile)  ->  o_ref: (hw_tile, c_tile)
    # Single XLU transpose on lane-dense 2D tiles; no reshapes inside the kernel.
    o_ref[...] = x_ref[...].T


# Conservative per-call block budget: in-block + out-block, each double-buffered
# by the software pipeline (4x block bytes).  8 MiB fits under the scoped-VMEM
# default on every generation (16 MiB v5e, 32 MiB v6e/v7x) with headroom.
_VMEM_BLOCK_BUDGET_BYTES = 8 * 1024 * 1024


def _choose_tiles(C: int, HW: int, dtype_bytes: int,
                  budget: int = _VMEM_BLOCK_BUDGET_BYTES):
    """Pick (c_tile, hw_tile): biggest tiles whose pipelined blocks fit VMEM."""

    def footprint(c_t, hw_t):
        return 4 * c_t * hw_t * dtype_bytes  # (in + out) x double-buffer

    # Fast path for the target workload: one full-slab block per batch element.
    if footprint(C, HW) <= budget:
        return C, HW

    def best_divisor(dim, max_tile):
        # Largest divisor of `dim` that is a multiple of 128 and <= max_tile
        # (keeps lanes dense / unmasked stores); fall back to the largest
        # divisor <= max_tile (still correct, possibly masked).
        best_aligned, best_any = None, 1
        for d in range(1, dim + 1):
            if dim % d or d > max_tile:
                continue
            best_any = d
            if d % 128 == 0:
                best_aligned = d
        return best_aligned if best_aligned is not None else best_any

    # Tile channels first (output lane dim = c_tile stays lane-dense when C has
    # a multiple-of-128 divisor), then tile H*W if still over budget.
    c_tile = best_divisor(C, max(1, budget // (4 * HW * dtype_bytes)))
    if footprint(c_tile, HW) <= budget:
        return c_tile, HW
    hw_tile = best_divisor(HW, max(1, budget // (4 * c_tile * dtype_bytes)))
    return c_tile, hw_tile


def permute_nchw_to_nhwc(x):
    """x: (N, C, H, W) -> (N, H, W, C) via a Pallas TPU kernel."""
    N, C, H, W = x.shape
    HW = H * W
    dtype_bytes = jnp.dtype(x.dtype).itemsize

    # Contiguous (free) reshape: each (C, H*W) slab is already row-major.
    x2d = x.reshape(N, C, HW)

    c_tile, hw_tile = _choose_tiles(C, HW, dtype_bytes)
    grid = (N, C // c_tile, HW // hw_tile)  # (1, 1, 1) for the target shape

    out2d = pl.pallas_call(
        _transpose_kernel,
        out_shape=jax.ShapeDtypeStruct((N, HW, C), x.dtype),
        grid=grid,
        in_specs=[
            # None squeezes the batch dim out of the kernel ref -> 2D block.
            pl.BlockSpec((None, c_tile, hw_tile), lambda n, c, h: (n, c, h)),
        ],
        out_specs=pl.BlockSpec((None, hw_tile, c_tile), lambda n, c, h: (n, h, c)),
        compiler_params=pltpu.CompilerParams(
            # All blocks are independent; lets v7x shard across TensorCores
            # when the grid actually has >1 step (no-op for (1,1,1)).
            dimension_semantics=("parallel", "parallel", "parallel"),
        ),
        cost_estimate=pl.CostEstimate(
            flops=0,
            transcendentals=0,
            bytes_accessed=2 * N * C * HW * dtype_bytes,
        ),
    )(x2d)

    # Contiguous (free) reshape back to NHWC.
    return out2d.reshape(N, H, W, C)


if __name__ == "__main__":
    key = jax.random.PRNGKey(0)

    # Shape from the module: x108 = torch.randn([1, 768, 14, 14])
    x = jax.random.normal(key, (1, 768, 14, 14), dtype=jnp.float32)
    out = jax.block_until_ready(permute_nchw_to_nhwc(x))
    ref = jnp.transpose(x, (0, 2, 3, 1))
    assert out.shape == (1, 14, 14, 768)
    assert out.dtype == x.dtype
    assert jnp.array_equal(out, ref)

    # Small secondary shape exercising the non-128-divisible / multi-batch path.
    x_small = jax.random.normal(key, (2, 96, 8, 8), dtype=jnp.float32)
    out_small = jax.block_until_ready(permute_nchw_to_nhwc(x_small))
    assert jnp.array_equal(out_small, jnp.transpose(x_small, (0, 2, 3, 1)))

    print("KERNEL_OK")
</pallas_src>

<mosaic_0001>
module attributes {stable_mosaic.version = 11 : i64} {
  func.func @_transpose_kernel(%arg0: i32, %arg1: i32, %arg2: i32, %arg3: memref<1x768x196xf32, #tpu.memory_space<vmem>>, %arg4: memref<1x196x768xf32, #tpu.memory_space<vmem>>) attributes {dimension_semantics = [#tpu.dimension_semantics<parallel>, #tpu.dimension_semantics<parallel>, #tpu.dimension_semantics<parallel>], iteration_bounds = array<i64: 1, 1, 1>, scalar_prefetch = 0 : i64, scratch_operands = 0 : i64, tpu.core_type = #tpu.core_type<tc>, window_params = [{transform_indices = @transform_0, window_bounds = array<i64: 1, 768, 196>}, {transform_indices = @transform_1, window_bounds = array<i64: 1, 196, 768>}]} {
    %c0 = arith.constant 0 : index
    %c0_0 = arith.constant 0 : index
    %c0_1 = arith.constant 0 : index
    %0 = vector.load %arg3[%c0, %c0_0, %c0_1] : memref<1x768x196xf32, #tpu.memory_space<vmem>>, vector<1x768x196xf32>
    %1 = vector.shape_cast %0 : vector<1x768x196xf32> to vector<768x196xf32>
    %2 = tpu.transpose %1, [1, 0] : vector<768x196xf32> -> vector<196x768xf32>
    %c0_2 = arith.constant 0 : index
    %c0_3 = arith.constant 0 : index
    %c0_4 = arith.constant 0 : index
    %3 = vector.load %arg4[%c0_2, %c0_3, %c0_4] : memref<1x196x768xf32, #tpu.memory_space<vmem>>, vector<1x196x768xf32>
    %4 = vector.shape_cast %3 : vector<1x196x768xf32> to vector<196x768xf32>
    %5 = vector.shape_cast %2 : vector<196x768xf32> to vector<1x196x768xf32>
    tpu.vector_store %arg4[%c0_2, %c0_3, %c0_4], %5 {strides = array<i32>} : memref<1x196x768xf32, #tpu.memory_space<vmem>>, vector<1x196x768xf32>,
    return
  }
  func.func @transform_0(%arg0: i32, %arg1: i32, %arg2: i32) -> (i32, i32, i32) {
    %c0_i32 = arith.constant 0 : i32
    return %arg0, %arg1, %arg2 : i32, i32, i32
  }
  func.func @transform_1(%arg0: i32, %arg1: i32, %arg2: i32) -> (i32, i32, i32) {
    %c0_i32 = arith.constant 0 : i32
    return %arg0, %arg2, %arg1 : i32, i32, i32
  }
}

</mosaic_0001>

<llo_original>
// kernel: tpu_custom_call.1
$region0: #{tpu_custom_call.1}
  #allocation0 [shape = 'u32[]', space=smem, size = 0x4, offset = 0x4, fixed_abs, tag = 'smem constant byte address 0x4 - core index']
  #allocation1 [shape = 'u32[144,128]{1,0:T(1,128)}', space=vmem, size = 0x12000, scoped, tag = 'internal scratch']
  %s0 = inlined_call_operand.vmem [shape: f32[1,768,196], index: 0, kind: input, shape index: {}]
  %s1 = inlined_call_operand.vmem [shape: f32[1,196,768], index: 1, kind: output, shape index: {}]
  %s2 = sld [smem:[#allocation0]]
  $region14: #{tpu_custom_call.1} parent=0
    _
  %s4 = ssub.s32 1, %s2
  %s5 = scalar_select 0, %s4, %s2
  // Predicated region
  $region2: #{tpu_custom_call.1} parent=0 // pred_check
    _
  $region3: #{tpu_custom_call.1} parent=0 // pred_check_branch
    %7 = sbr.rel (0) target = $region5
  $region4: #{tpu_custom_call.1} parent=0 // pred_region
    _
  $region5: #{tpu_custom_call.1} parent=0 // pred_fallthru
    _
  %v8 = vld [vmem:[%s0] sm:$0xff]
  %v9 = vld [vmem:[%s0 + $0x8] sm:$0xff]
  %v10 = vld [vmem:[%s0 + $0x10] sm:$0xff]
  %v11 = vld [vmem:[%s0 + $0x18] sm:$0xff]
  %v12 = vld [vmem:[%s0 + $0x20] sm:$0xff]
  %v13 = vld [vmem:[%s0 + $0x28] sm:$0xff]
  %v14 = vld [vmem:[%s0 + $0x30] sm:$0xff]
  %v15 = vld [vmem:[%s0 + $0x38] sm:$0xff]
  %v16 = vld [vmem:[%s0 + $0x40] sm:$0xff]
  %v17 = vld [vmem:[%s0 + $0x48] sm:$0xff]
  %v18 = vld [vmem:[%s0 + $0x50] sm:$0xff]
  %v19 = vld [vmem:[%s0 + $0x58] sm:$0xff]
  %v20 = vld [vmem:[%s0 + $0x60] sm:$0xff]
  %v21 = vld [vmem:[%s0 + $0x68] sm:$0xff]
  %v22 = vld [vmem:[%s0 + $0x70] sm:$0xff]
  %v23 = vld [vmem:[%s0 + $0x78] sm:$0xff]
  %v24 = vld [vmem:[%s0 + $0x80] sm:$0xff]
  %v25 = vld [vmem:[%s0 + $0x88] sm:$0xff]
  %v26 = vld [vmem:[%s0 + $0x90] sm:$0xff]
  %v27 = vld [vmem:[%s0 + $0x98] sm:$0xff]
  %v28 = vld [vmem:[%s0 + $0xa0] sm:$0xff]
  %v29 = vld [vmem:[%s0 + $0xa8] sm:$0xff]
  %v30 = vld [vmem:[%s0 + $0xb0] sm:$0xff]
  %v31 = vld [vmem:[%s0 + $0xb8] sm:$0xff]
  %v32 = vld [vmem:[%s0 + $0xc0] sm:$0xff]
  %v33 = vld [vmem:[%s0 + $0xc8] sm:$0xff]
  %v34 = vld [vmem:[%s0 + $0xd0] sm:$0xff]
  %v35 = vld [vmem:[%s0 + $0xd8] sm:$0xff]
  %v36 = vld [vmem:[%s0 + $0xe0] sm:$0xff]
  %v37 = vld [vmem:[%s0 + $0xe8] sm:$0xff]
  %v38 = vld [vmem:[%s0 + $0xf0] sm:$0xff]
  %v39 = vld [vmem:[%s0 + $0xf8] sm:$0xff]
  %v40 = vld [vmem:[%s0 + $0x100] sm:$0xff]
  %v41 = vld [vmem:[%s0 + $0x108] sm:$0xff]
  %v42 = vld [vmem:[%s0 + $0x110] sm:$0xff]
  %v43 = vld [vmem:[%s0 + $0x118] sm:$0xff]
  %v44 = vld [vmem:[%s0 + $0x120] sm:$0xff]
  %v45 = vld [vmem:[%s0 + $0x128] sm:$0xff]
  %v46 = vld [vmem:[%s0 + $0x130] sm:$0xff]
  %v47 = vld [vmem:[%s0 + $0x138] sm:$0xff]
  %v48 = vld [vmem:[%s0 + $0x140] sm:$0xff]
  %v49 = vld [vmem:[%s0 + $0x148] sm:$0xff]
  %v50 = vld [vmem:[%s0 + $0x150] sm:$0xff]
  %v51 = vld [vmem:[%s0 + $0x158] sm:$0xff]
  %v52 = vld [vmem:[%s0 + $0x160] sm:$0xff]
  %v53 = vld [vmem:[%s0 + $0x168] sm:$0xff]
  %v54 = vld [vmem:[%s0 + $0x170] sm:$0xff]
  %v55 = vld [vmem:[%s0 + $0x178] sm:$0xff]
  %v56 = vld [vmem:[%s0 + $0x180] sm:$0xff]
  %v57 = vld [vmem:[%s0 + $0x188] sm:$0xff]
  %v58 = vld [vmem:[%s0 + $0x190] sm:$0xff]
  %v59 = vld [vmem:[%s0 + $0x198] sm:$0xff]
  %v60 = vld [vmem:[%s0 + $0x1a0] sm:$0xff]
  %v61 = vld [vmem:[%s0 + $0x1a8] sm:$0xff]
  %v62 = vld [vmem:[%s0 + $0x1b0] sm:$0xff]
  %v63 = vld [vmem:[%s0 + $0x1b8] sm:$0xff]
  %v64 = vld [vmem:[%s0 + $0x1c0] sm:$0xff]
  %v65 = vld [vmem:[%s0 + $0x1c8] sm:$0xff]
  %v66 = vld [vmem:[%s0 + $0x1d0] sm:$0xff]
  %v67 = vld [vmem:[%s0 + $0x1d8] sm:$0xff]
  %v68 = vld [vmem:[%s0 + $0x1e0] sm:$0xff]
  %v69 = vld [vmem:[%s0 + $0x1e8] sm:$0xff]
  %v70 = vld [vmem:[%s0 + $0x1f0] sm:$0xff]
  %v71 = vld [vmem:[%s0 + $0x1f8] sm:$0xff]
  %v72 = vld [vmem:[%s0 + $0x200] sm:$0xff]
  %v73 = vld [vmem:[%s0 + $0x208] sm:$0xff]
  %v74 = vld [vmem:[%s0 + $0x210] sm:$0xff]
  %v75 = vld [vmem:[%s0 + $0x218] sm:$0xff]
  %v76 = vld [vmem:[%s0 + $0x220] sm:$0xff]
  %v77 = vld [vmem:[%s0 + $0x228] sm:$0xff]
  %v78 = vld [vmem:[%s0 + $0x230] sm:$0xff]
  %v79 = vld [vmem:[%s0 + $0x238] sm:$0xff]
  %v80 = vld [vmem:[%s0 + $0x240] sm:$0xff]
  %v81 = vld [vmem:[%s0 + $0x248] sm:$0xff]
  %v82 = vld [vmem:[%s0 + $0x250] sm:$0xff]
  %v83 = vld [vmem:[%s0 + $0x258] sm:$0xff]
  %v84 = vld [vmem:[%s0 + $0x260] sm:$0xff]
  %v85 = vld [vmem:[%s0 + $0x268] sm:$0xff]
  %v86 = vld [vmem:[%s0 + $0x270] sm:$0xff]
  %v87 = vld [vmem:[%s0 + $0x278] sm:$0xff]
  %v88 = vld [vmem:[%s0 + $0x280] sm:$0xff]
  %v89 = vld [vmem:[%s0 + $0x288] sm:$0xff]
  %v90 = vld [vmem:[%s0 + $0x290] sm:$0xff]
  %v91 = vld [vmem:[%s0 + $0x298] sm:$0xff]
  %v92 = vld [vmem:[%s0 + $0x2a0] sm:$0xff]
  %v93 = vld [vmem:[%s0 + $0x2a8] sm:$0xff]
  %v94 = vld [vmem:[%s0 + $0x2b0] sm:$0xff]
  %v95 = vld [vmem:[%s0 + $0x2b8] sm:$0xff]
  %v96 = vld [vmem:[%s0 + $0x2c0] sm:$0xff]
  %v97 = vld [vmem:[%s0 + $0x2c8] sm:$0xff]
  %v98 = vld [vmem:[%s0 + $0x2d0] sm:$0xff]
  %v99 = vld [vmem:[%s0 + $0x2d8] sm:$0xff]
  %v100 = vld [vmem:[%s0 + $0x2e0] sm:$0xff]
  %v101 = vld [vmem:[%s0 + $0x2e8] sm:$0xff]
  %v102 = vld [vmem:[%s0 + $0x2f0] sm:$0xff]
  %v103 = vld [vmem:[%s0 + $0x2f8] sm:$0xff]
  %v104 = vld [vmem:[%s0 + $0x300] sm:$0xff]
  %v105 = vld [vmem:[%s0 + $0x308] sm:$0xff]
  %v106 = vld [vmem:[%s0 + $0x310] sm:$0xff]
  %v107 = vld [vmem:[%s0 + $0x318] sm:$0xff]
  %v108 = vld [vmem:[%s0 + $0x320] sm:$0xff]
  %v109 = vld [vmem:[%s0 + $0x328] sm:$0xff]
  %v110 = vld [vmem:[%s0 + $0x330] sm:$0xff]
  %v111 = vld [vmem:[%s0 + $0x338] sm:$0xff]
  %v112 = vld [vmem:[%s0 + $0x340] sm:$0xff]
  %v113 = vld [vmem:[%s0 + $0x348] sm:$0xff]
  %v114 = vld [vmem:[%s0 + $0x350] sm:$0xff]
  %v115 = vld [vmem:[%s0 + $0x358] sm:$0xff]
  %v116 = vld [vmem:[%s0 + $0x360] sm:$0xff]
  %v117 = vld [vmem:[%s0 + $0x368] sm:$0xff]
  %v118 = vld [vmem:[%s0 + $0x370] sm:$0xff]
  %v119 = vld [vmem:[%s0 + $0x378] sm:$0xff]
  %v120 = vld [vmem:[%s0 + $0x380] sm:$0xff]
  %v121 = vld [vmem:[%s0 + $0x388] sm:$0xff]
  %v122 = vld [vmem:[%s0 + $0x390] sm:$0xff]
  %v123 = vld [vmem:[%s0 + $0x398] sm:$0xff]
  %v124 = vld [vmem:[%s0 + $0x3a0] sm:$0xff]
  %v125 = vld [vmem:[%s0 + $0x3a8] sm:$0xff]
  %v126 = vld [vmem:[%s0 + $0x3b0] sm:$0xff]
  %v127 = vld [vmem:[%s0 + $0x3b8] sm:$0xff]
  %v128 = vld [vmem:[%s0 + $0x3c0] sm:$0xff]
  %v129 = vld [vmem:[%s0 + $0x3c8] sm:$0xff]
  %v130 = vld [vmem:[%s0 + $0x3d0] sm:$0xff]
  %v131 = vld [vmem:[%s0 + $0x3d8] sm:$0xff]
  %v132 = vld [vmem:[%s0 + $0x3e0] sm:$0xff]
  %v133 = vld [vmem:[%s0 + $0x3e8] sm:$0xff]
  %v134 = vld [vmem:[%s0 + $0x3f0] sm:$0xff]
  %v135 = vld [vmem:[%s0 + $0x3f8] sm:$0xff]
  %v136 = vld [vmem:[%s0 + $0x400] sm:$0xff]
  %v137 = vld [vmem:[%s0 + $0x408] sm:$0xff]
  %v138 = vld [vmem:[%s0 + $0x410] sm:$0xff]
  %v139 = vld [vmem:[%s0 + $0x418] sm:$0xff]
  %v140 = vld [vmem:[%s0 + $0x420] sm:$0xff]
  %v141 = vld [vmem:[%s0 + $0x428] sm:$0xff]
  %v142 = vld [vmem:[%s0 + $0x430] sm:$0xff]
  %v143 = vld [vmem:[%s0 + $0x438] sm:$0xff]
  %v144 = vld [vmem:[%s0 + $0x440] sm:$0xff]
  %v145 = vld [vmem:[%s0 + $0x448] sm:$0xff]
  %v146 = vld [vmem:[%s0 + $0x450] sm:$0xff]
  %v147 = vld [vmem:[%s0 + $0x458] sm:$0xff]
  %v148 = vld [vmem:[%s0 + $0x460] sm:$0xff]
  %v149 = vld [vmem:[%s0 + $0x468] sm:$0xff]
  %v150 = vld [vmem:[%s0 + $0x470] sm:$0xff]
  %v151 = vld [vmem:[%s0 + $0x478] sm:$0xff]
  %v152 = vld [vmem:[%s0 + $0x480] sm:$0xff]
  %v153 = vld [vmem:[%s0 + $0x488] sm:$0xff]
  %v154 = vld [vmem:[%s0 + $0x490] sm:$0xff]
  %v155 = vld [vmem:[%s0 + $0x498] sm:$0xff]
  %v156 = vld [vmem:[%s0 + $0x4a0] sm:$0xff]
  %v157 = vld [vmem:[%s0 + $0x4a8] sm:$0xff]
  %v158 = vld [vmem:[%s0 + $0x4b0] sm:$0xff]
  %v159 = vld [vmem:[%s0 + $0x4b8] sm:$0xff]
  %v160 = vld [vmem:[%s0 + $0x4c0] sm:$0xff]
  %v161 = vld [vmem:[%s0 + $0x4c8] sm:$0xff]
  %v162 = vld [vmem:[%s0 + $0x4d0] sm:$0xff]
  %v163 = vld [vmem:[%s0 + $0x4d8] sm:$0xff]
  %v164 = vld [vmem:[%s0 + $0x4e0] sm:$0xff]
  %v165 = vld [vmem:[%s0 + $0x4e8] sm:$0xff]
  %v166 = vld [vmem:[%s0 + $0x4f0] sm:$0xff]
  %v167 = vld [vmem:[%s0 + $0x4f8] sm:$0xff]
  %v168 = vld [vmem:[%s0 + $0x500] sm:$0xff]
  %v169 = vld [vmem:[%s0 + $0x508] sm:$0xff]
  %v170 = vld [vmem:[%s0 + $0x510] sm:$0xff]
  %v171 = vld [vmem:[%s0 + $0x518] sm:$0xff]
  %v172 = vld [vmem:[%s0 + $0x520] sm:$0xff]
  %v173 = vld [vmem:[%s0 + $0x528] sm:$0xff]
  %v174 = vld [vmem:[%s0 + $0x530] sm:$0xff]
  %v175 = vld [vmem:[%s0 + $0x538] sm:$0xff]
  %v176 = vld [vmem:[%s0 + $0x540] sm:$0xff]
  %v177 = vld [vmem:[%s0 + $0x548] sm:$0xff]
  %v178 = vld [vmem:[%s0 + $0x550] sm:$0xff]
  %v179 = vld [vmem:[%s0 + $0x558] sm:$0xff]
  %v180 = vld [vmem:[%s0 + $0x560] sm:$0xff]
  %v181 = vld [vmem:[%s0 + $0x568] sm:$0xff]
  %v182 = vld [vmem:[%s0 + $0x570] sm:$0xff]
  %v183 = vld [vmem:[%s0 + $0x578] sm:$0xff]
  %v184 = vld [vmem:[%s0 + $0x580] sm:$0xff]
  %v185 = vld [vmem:[%s0 + $0x588] sm:$0xff]
  %v186 = vld [vmem:[%s0 + $0x590] sm:$0xff]
  %v187 = vld [vmem:[%s0 + $0x598] sm:$0xff]
  %v188 = vld [vmem:[%s0 + $0x5a0] sm:$0xff]
  %v189 = vld [vmem:[%s0 + $0x5a8] sm:$0xff]
  %v190 = vld [vmem:[%s0 + $0x5b0] sm:$0xff]
  %v191 = vld [vmem:[%s0 + $0x5b8] sm:$0xff]
  %v192 = vld [vmem:[%s0 + $0x5c0] sm:$0xff]
  %v193 = vld [vmem:[%s0 + $0x5c8] sm:$0xff]
  %v194 = vld [vmem:[%s0 + $0x5d0] sm:$0xff]
  %v195 = vld [vmem:[%s0 + $0x5d8] sm:$0xff]
  %v196 = vld [vmem:[%s0 + $0x5e0] sm:$0xff]
  %v197 = vld [vmem:[%s0 + $0x5e8] sm:$0xff]
  %v198 = vld [vmem:[%s0 + $0x5f0] sm:$0xff]
  %v199 = vld [vmem:[%s0 + $0x5f8] sm:$0xff]
  %200 = vxpose.xlu0.b32.start [1/16] %v8, 128
  %201 = vxpose.xlu0.b32.cont [2/16] %v10, 128
  %202 = vxpose.xlu0.b32.cont [3/16] %v12, 128
  %203 = vxpose.xlu0.b32.cont [4/16] %v14, 128
  %204 = vxpose.xlu0.b32.cont [5/16] %v16, 128
  %205 = vxpose.xlu0.b32.cont [6/16] %v18, 128
  %206 = vxpose.xlu0.b32.cont [7/16] %v20, 128
  %207 = vxpose.xlu0.b32.cont [8/16] %v22, 128
  %208 = vxpose.xlu0.b32.cont [9/16] %v24, 128
  %209 = vxpose.xlu0.b32.cont [10/16] %v26, 128
  %210 = vxpose.xlu0.b32.cont [11/16] %v28, 128
  %211 = vxpose.xlu0.b32.cont [12/16] %v30, 128
  %212 = vxpose.xlu0.b32.cont [13/16] %v32, 128
  %213 = vxpose.xlu0.b32.cont [14/16] %v34, 128
  %214 = vxpose.xlu0.b32.cont [15/16] %v36, 128
  %215 = vxpose.xlu0.b32.end [16/16] %v38, 128
  %v216 = vpop.trf.xlu0
  %v217 = vpop.trf.xlu0
  %v218 = vpop.trf.xlu0
  %v219 = vpop.trf.xlu0
  %v220 = vpop.trf.xlu0
  %v221 = vpop.trf.xlu0
  %v222 = vpop.trf.xlu0
  %v223 = vpop.trf.xlu0
  %v224 = vpop.trf.xlu0
  %v225 = vpop.trf.xlu0
  %v226 = vpop.trf.xlu0
  %v227 = vpop.trf.xlu0
  %v228 = vpop.trf.xlu0
  %v229 = vpop.trf.xlu0
  %v230 = vpop.trf.xlu0
  %v231 = vpop.trf.xlu0
  %232 = vxpose.xlu0.b32.start [1/16] %v9, 128
  %233 = vxpose.xlu0.b32.cont [2/16] %v11, 128
  %234 = vxpose.xlu0.b32.cont [3/16] %v13, 128
  %235 = vxpose.xlu0.b32.cont [4/16] %v15, 128
  %236 = vxpose.xlu0.b32.cont [5/16] %v17, 128
  %237 = vxpose.xlu0.b32.cont [6/16] %v19, 128
  %238 = vxpose.xlu0.b32.cont [7/16] %v21, 128
  %239 = vxpose.xlu0.b32.cont [8/16] %v23, 128
  %240 = vxpose.xlu0.b32.cont [9/16] %v25, 128
  %241 = vxpose.xlu0.b32.cont [10/16] %v27, 128
  %242 = vxpose.xlu0.b32.cont [11/16] %v29, 128
  %243 = vxpose.xlu0.b32.cont [12/16] %v31, 128
  %244 = vxpose.xlu0.b32.cont [13/16] %v33, 128
  %245 = vxpose.xlu0.b32.cont [14/16] %v35, 128
  %246 = vxpose.xlu0.b32.cont [15/16] %v37, 128
  %247 = vxpose.xlu0.b32.end [16/16] %v39, 128
  %v248 = vpop.trf.xlu0
  %v249 = vpop.trf.xlu0
  %v250 = vpop.trf.xlu0
  %v251 = vpop.trf.xlu0
  %v252 = vpop.trf.xlu0
  %v253 = vpop.trf.xlu0
  %v254 = vpop.trf.xlu0
  %v255 = vpop.trf.xlu0
  %v256 = vpop.trf.xlu0
  %v257 = vpop.trf.xlu0
  %v258 = vpop.trf.xlu0
  %v259 = vpop.trf.xlu0
  %v260 = vpop.trf.xlu0
  %v261 = vpop.trf.xlu0
  %v262 = vpop.trf.xlu0
  %v263 = vpop.trf.xlu0
  %264 = vxpose.xlu0.b32.start [1/16] %v40, 128
  %265 = vxpose.xlu0.b32.cont [2/16] %v42, 128
  %266 = vxpose.xlu0.b32.cont [3/16] %v44, 128
  %267 = vxpose.xlu0.b32.cont [4/16] %v46, 128
  %268 = vxpose.xlu0.b32.cont [5/16] %v48, 128
  %269 = vxpose.xlu0.b32.cont [6/16] %v50, 128
  %270 = vxpose.xlu0.b32.cont [7/16] %v52, 128
  %271 = vxpose.xlu0.b32.cont [8/16] %v54, 128
  %272 = vxpose.xlu0.b32.cont [9/16] %v56, 128
  %273 = vxpose.xlu0.b32.cont [10/16] %v58, 128
  %274 = vxpose.xlu0.b32.cont [11/16] %v60, 128
  %275 = vxpose.xlu0.b32.cont [12/16] %v62, 128
  %276 = vxpose.xlu0.b32.cont [13/16] %v64, 128
  %277 = vxpose.xlu0.b32.cont [14/16] %v66, 128
  %278 = vxpose.xlu0.b32.cont [15/16] %v68, 128
  %279 = vxpose.xlu0.b32.end [16/16] %v70, 128
  %v280 = vpop.trf.xlu0
  %v281 = vpop.trf.xlu0
  %v282 = vpop.trf.xlu0
  %v283 = vpop.trf.xlu0
  %v284 = vpop.trf.xlu0
  %v285 = vpop.trf.xlu0
  %v286 = vpop.trf.xlu0
  %v287 = vpop.trf.xlu0
  %v288 = vpop.trf.xlu0
  %v289 = vpop.trf.xlu0
  %v290 = vpop.trf.xlu0
  %v291 = vpop.trf.xlu0
  %v292 = vpop.trf.xlu0
  %v293 = vpop.trf.xlu0
  %v294 = vpop.trf.xlu0
  %v295 = vpop.trf.xlu0
  %296 = vxpose.xlu0.b32.start [1/16] %v41, 128
  %297 = vxpose.xlu0.b32.cont [2/16] %v43, 128
  %298 = vxpose.xlu0.b32.cont [3/16] %v45, 128
  %299 = vxpose.xlu0.b32.cont [4/16] %v47, 128
  %300 = vxpose.xlu0.b32.cont [5/16] %v49, 128
  %301 = vxpose.xlu0.b32.cont [6/16] %v51, 128
  %302 = vxpose.xlu0.b32.cont [7/16] %v53, 128
  %303 = vxpose.xlu0.b32.cont [8/16] %v55, 128
  %304 = vxpose.xlu0.b32.cont [9/16] %v57, 128
  %305 = vxpose.xlu0.b32.cont [10/16] %v59, 128
  %306 = vxpose.xlu0.b32.cont [11/16] %v61, 128
  %307 = vxpose.xlu0.b32.cont [12/16] %v63, 128
  %308 = vxpose.xlu0.b32.cont [13/16] %v65, 128
  %309 = vxpose.xlu0.b32.cont [14/16] %v67, 128
  %310 = vxpose.xlu0.b32.cont [15/16] %v69, 128
  %311 = vxpose.xlu0.b32.end [16/16] %v71, 128
  %v312 = vpop.trf.xlu0
  %v313 = vpop.trf.xlu0
  %v314 = vpop.trf.xlu0
  %v315 = vpop.trf.xlu0
  %v316 = vpop.trf.xlu0
  %v317 = vpop.trf.xlu0
  %v318 = vpop.trf.xlu0
  %v319 = vpop.trf.xlu0
  %v320 = vpop.trf.xlu0
  %v321 = vpop.trf.xlu0
  %v322 = vpop.trf.xlu0
  %v323 = vpop.trf.xlu0
  %v324 = vpop.trf.xlu0
  %v325 = vpop.trf.xlu0
  %v326 = vpop.trf.xlu0
  %v327 = vpop.trf.xlu0
  %328 = vxpose.xlu0.b32.start [1/16] %v72, 128
  %329 = vxpose.xlu0.b32.cont [2/16] %v74, 128
  %330 = vxpose.xlu0.b32.cont [3/16] %v76, 128
  %331 = vxpose.xlu0.b32.cont [4/16] %v78, 128
  %332 = vxpose.xlu0.b32.cont [5/16] %v80, 128
  %333 = vxpose.xlu0.b32.cont [6/16] %v82, 128
  %334 = vxpose.xlu0.b32.cont [7/16] %v84, 128
  %335 = vxpose.xlu0.b32.cont [8/16] %v86, 128
  %336 = vxpose.xlu0.b32.cont [9/16] %v88, 128
  %337 = vxpose.xlu0.b32.cont [10/16] %v90, 128
  %338 = vxpose.xlu0.b32.cont [11/16] %v92, 128
  %339 = vxpose.xlu0.b32.cont [12/16] %v94, 128
  %340 = vxpose.xlu0.b32.cont [13/16] %v96, 128
  %341 = vxpose.xlu0.b32.cont [14/16] %v98, 128
  %342 = vxpose.xlu0.b32.cont [15/16] %v100, 128
  %343 = vxpose.xlu0.b32.end [16/16] %v102, 128
  %v344 = vpop.trf.xlu0
  %v345 = vpop.trf.xlu0
  %v346 = vpop.trf.xlu0
  %v347 = vpop.trf.xlu0
  %v348 = vpop.trf.xlu0
  %v349 = vpop.trf.xlu0
  %v350 = vpop.trf.xlu0
  %v351 = vpop.trf.xlu0
  %v352 = vpop.trf.xlu0
  %v353 = vpop.trf.xlu0
  %v354 = vpop.trf.xlu0
  %v355 = vpop.trf.xlu0
  %v356 = vpop.trf.xlu0
  %v357 = vpop.trf.xlu0
  %v358 = vpop.trf.xlu0
  %v359 = vpop.trf.xlu0
  %360 = vxpose.xlu0.b32.start [1/16] %v73, 128
  %361 = vxpose.xlu0.b32.cont [2/16] %v75, 128
  %362 = vxpose.xlu0.b32.cont [3/16] %v77, 128
  %363 = vxpose.xlu0.b32.cont [4/16] %v79, 128
  %364 = vxpose.xlu0.b32.cont [5/16] %v81, 128
  %365 = vxpose.xlu0.b32.cont [6/16] %v83, 128
  %366 = vxpose.xlu0.b32.cont [7/16] %v85, 128
  %367 = vxpose.xlu0.b32.cont [8/16] %v87, 128
  %368 = vxpose.xlu0.b32.cont [9/16] %v89, 128
  %369 = vxpose.xlu0.b32.cont [10/16] %v91, 128
  %370 = vxpose.xlu0.b32.cont [11/16] %v93, 128
  %371 = vxpose.xlu0.b32.cont [12/16] %v95, 128
  %372 = vxpose.xlu0.b32.cont [13/16] %v97, 128
  %373 = vxpose.xlu0.b32.cont [14/16] %v99, 128
  %374 = vxpose.xlu0.b32.cont [15/16] %v101, 128
  %375 = vxpose.xlu0.b32.end [16/16] %v103, 128
  %v376 = vpop.trf.xlu0
  %v377 = vpop.trf.xlu0
  %v378 = vpop.trf.xlu0
  %v379 = vpop.trf.xlu0
  %v380 = vpop.trf.xlu0
  %v381 = vpop.trf.xlu0
  %v382 = vpop.trf.xlu0
  %v383 = vpop.trf.xlu0
  %v384 = vpop.trf.xlu0
  %v385 = vpop.trf.xlu0
  %v386 = vpop.trf.xlu0
  %v387 = vpop.trf.xlu0
  %v388 = vpop.trf.xlu0
  %v389 = vpop.trf.xlu0
  %v390 = vpop.trf.xlu0
  %v391 = vpop.trf.xlu0
  %392 = vxpose.xlu0.b32.start [1/16] %v104, 128
  %393 = vxpose.xlu0.b32.cont [2/16] %v106, 128
  %394 = vxpose.xlu0.b32.cont [3/16] %v108, 128
  %395 = vxpose.xlu0.b32.cont [4/16] %v110, 128
  %396 = vxpose.xlu0.b32.cont [5/16] %v112, 128
  %397 = vxpose.xlu0.b32.cont [6/16] %v114, 128
  %398 = vxpose.xlu0.b32.cont [7/16] %v116, 128
  %399 = vxpose.xlu0.b32.cont [8/16] %v118, 128
  %400 = vxpose.xlu0.b32.cont [9/16] %v120, 128
  %401 = vxpose.xlu0.b32.cont [10/16] %v122, 128
  %402 = vxpose.xlu0.b32.cont [11/16] %v124, 128
  %403 = vxpose.xlu0.b32.cont [12/16] %v126, 128
  %404 = vxpose.xlu0.b32.cont [13/16] %v128, 128
  %405 = vxpose.xlu0.b32.cont [14/16] %v130, 128
  %406 = vxpose.xlu0.b32.cont [15/16] %v132, 128
  %407 = vxpose.xlu0.b32.end [16/16] %v134, 128
  %v408 = vpop.trf.xlu0
  %v409 = vpop.trf.xlu0
  %v410 = vpop.trf.xlu0
  %v411 = vpop.trf.xlu0
  %v412 = vpop.trf.xlu0
  %v413 = vpop.trf.xlu0
  %v414 = vpop.trf.xlu0
  %v415 = vpop.trf.xlu0
  %v416 = vpop.trf.xlu0
  %v417 = vpop.trf.xlu0
  %v418 = vpop.trf.xlu0
  %v419 = vpop.trf.xlu0
  %v420 = vpop.trf.xlu0
  %v421 = vpop.trf.xlu0
  %v422 = vpop.trf.xlu0
  %v423 = vpop.trf.xlu0
  %424 = vxpose.xlu0.b32.start [1/16] %v105, 128
  %425 = vxpose.xlu0.b32.cont [2/16] %v107, 128
  %426 = vxpose.xlu0.b32.cont [3/16] %v109, 128
  %427 = vxpose.xlu0.b32.cont [4/16] %v111, 128
  %428 = vxpose.xlu0.b32.cont [5/16] %v113, 128
  %429 = vxpose.xlu0.b32.cont [6/16] %v115, 128
  %430 = vxpose.xlu0.b32.cont [7/16] %v117, 128
  %431 = vxpose.xlu0.b32.cont [8/16] %v119, 128
  %432 = vxpose.xlu0.b32.cont [9/16] %v121, 128
  %433 = vxpose.xlu0.b32.cont [10/16] %v123, 128
  %434 = vxpose.xlu0.b32.cont [11/16] %v125, 128
  %435 = vxpose.xlu0.b32.cont [12/16] %v127, 128
  %436 = vxpose.xlu0.b32.cont [13/16] %v129, 128
  %437 = vxpose.xlu0.b32.cont [14/16] %v131, 128
  %438 = vxpose.xlu0.b32.cont [15/16] %v133, 128
  %439 = vxpose.xlu0.b32.end [16/16] %v135, 128
  %v440 = vpop.trf.xlu0
  %v441 = vpop.trf.xlu0
  %v442 = vpop.trf.xlu0
  %v443 = vpop.trf.xlu0
  %v444 = vpop.trf.xlu0
  %v445 = vpop.trf.xlu0
  %v446 = vpop.trf.xlu0
  %v447 = vpop.trf.xlu0
  %v448 = vpop.trf.xlu0
  %v449 = vpop.trf.xlu0
  %v450 = vpop.trf.xlu0
  %v451 = vpop.trf.xlu0
  %v452 = vpop.trf.xlu0
  %v453 = vpop.trf.xlu0
  %v454 = vpop.trf.xlu0
  %v455 = vpop.trf.xlu0
  %456 = vxpose.xlu0.b32.start [1/16] %v136, 128
  %457 = vxpose.xlu0.b32.cont [2/16] %v138, 128
  %458 = vxpose.xlu0.b32.cont [3/16] %v140, 128
  %459 = vxpose.xlu0.b32.cont [4/16] %v142, 128
  %460 = vxpose.xlu0.b32.cont [5/16] %v144, 128
  %461 = vxpose.xlu0.b32.cont [6/16] %v146, 128
  %462 = vxpose.xlu0.b32.cont [7/16] %v148, 128
  %463 = vxpose.xlu0.b32.cont [8/16] %v150, 128
  %464 = vxpose.xlu0.b32.cont [9/16] %v152, 128
  %465 = vxpose.xlu0.b32.cont [10/16] %v154, 128
  %466 = vxpose.xlu0.b32.cont [11/16] %v156, 128
  %467 = vxpose.xlu0.b32.cont [12/16] %v158, 128
  %468 = vxpose.xlu0.b32.cont [13/16] %v160, 128
  %469 = vxpose.xlu0.b32.cont [14/16] %v162, 128
  %470 = vxpose.xlu0.b32.cont [15/16] %v164, 128
  %471 = vxpose.xlu0.b32.end [16/16] %v166, 128
  %v472 = vpop.trf.xlu0
  %v473 = vpop.trf.xlu0
  %v474 = vpop.trf.xlu0
  %v475 = vpop.trf.xlu0
  %v476 = vpop.trf.xlu0
  %v477 = vpop.trf.xlu0
  %v478 = vpop.trf.xlu0
  %v479 = vpop.trf.xlu0
  %v480 = vpop.trf.xlu0
  %v481 = vpop.trf.xlu0
  %v482 = vpop.trf.xlu0
  %v483 = vpop.trf.xlu0
  %v484 = vpop.trf.xlu0
  %v485 = vpop.trf.xlu0
  %v486 = vpop.trf.xlu0
  %v487 = vpop.trf.xlu0
  %488 = vxpose.xlu0.b32.start [1/16] %v137, 128
  %489 = vxpose.xlu0.b32.cont [2/16] %v139, 128
  %490 = vxpose.xlu0.b32.cont [3/16] %v141, 128
  %491 = vxpose.xlu0.b32.cont [4/16] %v143, 128
  %492 = vxpose.xlu0.b32.cont [5/16] %v145, 128
  %493 = vxpose.xlu0.b32.cont [6/16] %v147, 128
  %494 = vxpose.xlu0.b32.cont [7/16] %v149, 128
  %495 = vxpose.xlu0.b32.cont [8/16] %v151, 128
  %496 = vxpose.xlu0.b32.cont [9/16] %v153, 128
  %497 = vxpose.xlu0.b32.cont [10/16] %v155, 128
  %498 = vxpose.xlu0.b32.cont [11/16] %v157, 128
  %499 = vxpose.xlu0.b32.cont [12/16] %v159, 128
  %500 = vxpose.xlu0.b32.cont [13/16] %v161, 128
  %501 = vxpose.xlu0.b32.cont [14/16] %v163, 128
  %502 = vxpose.xlu0.b32.cont [15/16] %v165, 128
  %503 = vxpose.xlu0.b32.end [16/16] %v167, 128
  %v504 = vpop.trf.xlu0
  %v505 = vpop.trf.xlu0
  %v506 = vpop.trf.xlu0
  %v507 = vpop.trf.xlu0
  %v508 = vpop.trf.xlu0
  %v509 = vpop.trf.xlu0
  %v510 = vpop.trf.xlu0
  %v511 = vpop.trf.xlu0
  %v512 = vpop.trf.xlu0
  %v513 = vpop.trf.xlu0
  %v514 = vpop.trf.xlu0
  %v515 = vpop.trf.xlu0
  %v516 = vpop.trf.xlu0
  %v517 = vpop.trf.xlu0
  %v518 = vpop.trf.xlu0
  %v519 = vpop.trf.xlu0
  %520 = vxpose.xlu0.b32.start [1/16] %v168, 128
  %521 = vxpose.xlu0.b32.cont [2/16] %v170, 128
  %522 = vxpose.xlu0.b32.cont [3/16] %v172, 128
  %523 = vxpose.xlu0.b32.cont [4/16] %v174, 128
  %524 = vxpose.xlu0.b32.cont [5/16] %v176, 128
  %525 = vxpose.xlu0.b32.cont [6/16] %v178, 128
  %526 = vxpose.xlu0.b32.cont [7/16] %v180, 128
  %527 = vxpose.xlu0.b32.cont [8/16] %v182, 128
  %528 = vxpose.xlu0.b32.cont [9/16] %v184, 128
  %529 = vxpose.xlu0.b32.cont [10/16] %v186, 128
  %530 = vxpose.xlu0.b32.cont [11/16] %v188, 128
  %531 = vxpose.xlu0.b32.cont [12/16] %v190, 128
  %532 = vxpose.xlu0.b32.cont [13/16] %v192, 128
  %533 = vxpose.xlu0.b32.cont [14/16] %v194, 128
  %534 = vxpose.xlu0.b32.cont [15/16] %v196, 128
  %535 = vxpose.xlu0.b32.end [16/16] %v198, 128
  %v536 = vpop.trf.xlu0
  %v537 = vpop.trf.xlu0
  %v538 = vpop.trf.xlu0
  %v539 = vpop.trf.xlu0
  %v540 = vpop.trf.xlu0
  %v541 = vpop.trf.xlu0
  %v542 = vpop.trf.xlu0
  %v543 = vpop.trf.xlu0
  %v544 = vpop.trf.xlu0
  %v545 = vpop.trf.xlu0
  %v546 = vpop.trf.xlu0
  %v547 = vpop.trf.xlu0
  %v548 = vpop.trf.xlu0
  %v549 = vpop.trf.xlu0
  %v550 = vpop.trf.xlu0
  %v551 = vpop.trf.xlu0
  %552 = vxpose.xlu0.b32.start [1/16] %v169, 128
  %553 = vxpose.xlu0.b32.cont [2/16] %v171, 128
  %554 = vxpose.xlu0.b32.cont [3/16] %v173, 128
  %555 = vxpose.xlu0.b32.cont [4/16] %v175, 128
  %556 = vxpose.xlu0.b32.cont [5/16] %v177, 128
  %557 = vxpose.xlu0.b32.cont [6/16] %v179, 128
  %558 = vxpose.xlu0.b32.cont [7/16] %v181, 128
  %559 = vxpose.xlu0.b32.cont [8/16] %v183, 128
  %560 = vxpose.xlu0.b32.cont [9/16] %v185, 128
  %561 = vxpose.xlu0.b32.cont [10/16] %v187, 128
  %562 = vxpose.xlu0.b32.cont [11/16] %v189, 128
  %563 = vxpose.xlu0.b32.cont [12/16] %v191, 128
  %564 = vxpose.xlu0.b32.cont [13/16] %v193, 128
  %565 = vxpose.xlu0.b32.cont [14/16] %v195, 128
  %566 = vxpose.xlu0.b32.cont [15/16] %v197, 128
  %567 = vxpose.xlu0.b32.end [16/16] %v199, 128
  %v568 = vpop.trf.xlu0
  %v569 = vpop.trf.xlu0
  %v570 = vpop.trf.xlu0
  %v571 = vpop.trf.xlu0
  %v572 = vpop.trf.xlu0
  %v573 = vpop.trf.xlu0
  %v574 = vpop.trf.xlu0
  %v575 = vpop.trf.xlu0
  %v576 = vpop.trf.xlu0
  %v577 = vpop.trf.xlu0
  %v578 = vpop.trf.xlu0
  %v579 = vpop.trf.xlu0
  %v580 = vpop.trf.xlu0
  %v581 = vpop.trf.xlu0
  %v582 = vpop.trf.xlu0
  %v583 = vpop.trf.xlu0
  %584 = vst [vmem:[%s1] sm:$0xff] %v216
  %585 = vst [vmem:[%s1 + $0x8] sm:$0xff] %v280
  %586 = vst [vmem:[%s1 + $0x10] sm:$0xff] %v344
  %587 = vst [vmem:[%s1 + $0x18] sm:$0xff] %v408
  %588 = vst [vmem:[%s1 + $0x20] sm:$0xff] %v472
  %589 = vst [vmem:[%s1 + $0x28] sm:$0xff] %v536
  %590 = vst [vmem:[%s1 + $0x30] sm:$0xff] %v217
  %591 = vst [vmem:[%s1 + $0x38] sm:$0xff] %v281
  %592 = vst [vmem:[%s1 + $0x40] sm:$0xff] %v345
  %593 = vst [vmem:[%s1 + $0x48] sm:$0xff] %v409
  %594 = vst [vmem:[%s1 + $0x50] sm:$0xff] %v473
  %595 = vst [vmem:[%s1 + $0x58] sm:$0xff] %v537
  %596 = vst [vmem:[%s1 + $0x60] sm:$0xff] %v218
  %597 = vst [vmem:[%s1 + $0x68] sm:$0xff] %v282
  %598 = vst [vmem:[%s1 + $0x70] sm:$0xff] %v346
  %599 = vst [vmem:[%s1 + $0x78] sm:$0xff] %v410
  %600 = vst [vmem:[%s1 + $0x80] sm:$0xff] %v474
  %601 = vst [vmem:[%s1 + $0x88] sm:$0xff] %v538
  %602 = vst [vmem:[%s1 + $0x90] sm:$0xff] %v219
  %603 = vst [vmem:[%s1 + $0x98] sm:$0xff] %v283
  %604 = vst [vmem:[%s1 + $0xa0] sm:$0xff] %v347
  %605 = vst [vmem:[%s1 + $0xa8] sm:$0xff] %v411
  %606 = vst [vmem:[%s1 + $0xb0] sm:$0xff] %v475
  %607 = vst [vmem:[%s1 + $0xb8] sm:$0xff] %v539
  %608 = vst [vmem:[%s1 + $0xc0] sm:$0xff] %v220
  %609 = vst [vmem:[%s1 + $0xc8] sm:$0xff] %v284
  %610 = vst [vmem:[%s1 + $0xd0] sm:$0xff] %v348
  %611 = vst [vmem:[%s1 + $0xd8] sm:$0xff] %v412
  %612 = vst [vmem:[%s1 + $0xe0] sm:$0xff] %v476
  %613 = vst [vmem:[%s1 + $0xe8] sm:$0xff] %v540
  %614 = vst [vmem:[%s1 + $0xf0] sm:$0xff] %v221
  %615 = vst [vmem:[%s1 + $0xf8] sm:$0xff] %v285
  %616 = vst [vmem:[%s1 + $0x100] sm:$0xff] %v349
  %617 = vst [vmem:[%s1 + $0x108] sm:$0xff] %v413
  %618 = vst [vmem:[%s1 + $0x110] sm:$0xff] %v477
  %619 = vst [vmem:[%s1 + $0x118] sm:$0xff] %v541
  %620 = vst [vmem:[%s1 + $0x120] sm:$0xff] %v222
  %621 = vst [vmem:[%s1 + $0x128] sm:$0xff] %v286
  %622 = vst [vmem:[%s1 + $0x130] sm:$0xff] %v350
  %623 = vst [vmem:[%s1 + $0x138] sm:$0xff] %v414
  %624 = vst [vmem:[%s1 + $0x140] sm:$0xff] %v478
  %625 = vst [vmem:[%s1 + $0x148] sm:$0xff] %v542
  %626 = vst [vmem:[%s1 + $0x150] sm:$0xff] %v223
  %627 = vst [vmem:[%s1 + $0x158] sm:$0xff] %v287
  %628 = vst [vmem:[%s1 + $0x160] sm:$0xff] %v351
  %629 = vst [vmem:[%s1 + $0x168] sm:$0xff] %v415
  %630 = vst [vmem:[%s1 + $0x170] sm:$0xff] %v479
  %631 = vst [vmem:[%s1 + $0x178] sm:$0xff] %v543
  %632 = vst [vmem:[%s1 + $0x180] sm:$0xff] %v224
  %633 = vst [vmem:[%s1 + $0x188] sm:$0xff] %v288
  %634 = vst [vmem:[%s1 + $0x190] sm:$0xff] %v352
  %635 = vst [vmem:[%s1 + $0x198] sm:$0xff] %v416
  %636 = vst [vmem:[%s1 + $0x1a0] sm:$0xff] %v480
  %637 = vst [vmem:[%s1 + $0x1a8] sm:$0xff] %v544
  %638 = vst [vmem:[%s1 + $0x1b0] sm:$0xff] %v225
  %639 = vst [vmem:[%s1 + $0x1b8] sm:$0xff] %v289
  %640 = vst [vmem:[%s1 + $0x1c0] sm:$0xff] %v353
  %641 = vst [vmem:[%s1 + $0x1c8] sm:$0xff] %v417
  %642 = vst [vmem:[%s1 + $0x1d0] sm:$0xff] %v481
  %643 = vst [vmem:[%s1 + $0x1d8] sm:$0xff] %v545
  %644 = vst [vmem:[%s1 + $0x1e0] sm:$0xff] %v226
  %645 = vst [vmem:[%s1 + $0x1e8] sm:$0xff] %v290
  %646 = vst [vmem:[%s1 + $0x1f0] sm:$0xff] %v354
  %647 = vst [vmem:[%s1 + $0x1f8] sm:$0xff] %v418
  %648 = vst [vmem:[%s1 + $0x200] sm:$0xff] %v482
  %649 = vst [vmem:[%s1 + $0x208] sm:$0xff] %v546
  %650 = vst [vmem:[%s1 + $0x210] sm:$0xff] %v227
  %651 = vst [vmem:[%s1 + $0x218] sm:$0xff] %v291
  %652 = vst [vmem:[%s1 + $0x220] sm:$0xff] %v355
  %653 = vst [vmem:[%s1 + $0x228] sm:$0xff] %v419
  %654 = vst [vmem:[%s1 + $0x230] sm:$0xff] %v483
  %655 = vst [vmem:[%s1 + $0x238] sm:$0xff] %v547
  %656 = vst [vmem:[%s1 + $0x240] sm:$0xff] %v228
  %657 = vst [vmem:[%s1 + $0x248] sm:$0xff] %v292
  %658 = vst [vmem:[%s1 + $0x250] sm:$0xff] %v356
  %659 = vst [vmem:[%s1 + $0x258] sm:$0xff] %v420
  %660 = vst [vmem:[%s1 + $0x260] sm:$0xff] %v484
  %661 = vst [vmem:[%s1 + $0x268] sm:$0xff] %v548
  %662 = vst [vmem:[%s1 + $0x270] sm:$0xff] %v229
  %663 = vst [vmem:[%s1 + $0x278] sm:$0xff] %v293
  %664 = vst [vmem:[%s1 + $0x280] sm:$0xff] %v357
  %665 = vst [vmem:[%s1 + $0x288] sm:$0xff] %v421
  %666 = vst [vmem:[%s1 + $0x290] sm:$0xff] %v485
  %667 = vst [vmem:[%s1 + $0x298] sm:$0xff] %v549
  %668 = vst [vmem:[%s1 + $0x2a0] sm:$0xff] %v230
  %669 = vst [vmem:[%s1 + $0x2a8] sm:$0xff] %v294
  %670 = vst [vmem:[%s1 + $0x2b0] sm:$0xff] %v358
  %671 = vst [vmem:[%s1 + $0x2b8] sm:$0xff] %v422
  %672 = vst [vmem:[%s1 + $0x2c0] sm:$0xff] %v486
  %673 = vst [vmem:[%s1 + $0x2c8] sm:$0xff] %v550
  %674 = vst [vmem:[%s1 + $0x2d0] sm:$0xff] %v231
  %675 = vst [vmem:[%s1 + $0x2d8] sm:$0xff] %v295
  %676 = vst [vmem:[%s1 + $0x2e0] sm:$0xff] %v359
  %677 = vst [vmem:[%s1 + $0x2e8] sm:$0xff] %v423
  %678 = vst [vmem:[%s1 + $0x2f0] sm:$0xff] %v487
  %679 = vst [vmem:[%s1 + $0x2f8] sm:$0xff] %v551
  %680 = vst [vmem:[%s1 + $0x300] sm:$0xff] %v248
  %681 = vst [vmem:[%s1 + $0x308] sm:$0xff] %v312
  %682 = vst [vmem:[%s1 + $0x310] sm:$0xff] %v376
  %683 = vst [vmem:[%s1 + $0x318] sm:$0xff] %v440
  %684 = vst [vmem:[%s1 + $0x320] sm:$0xff] %v504
  %685 = vst [vmem:[%s1 + $0x328] sm:$0xff] %v568
  %686 = vst [vmem:[%s1 + $0x330] sm:$0xff] %v249
  %687 = vst [vmem:[%s1 + $0x338] sm:$0xff] %v313
  %688 = vst [vmem:[%s1 + $0x340] sm:$0xff] %v377
  %689 = vst [vmem:[%s1 + $0x348] sm:$0xff] %v441
  %690 = vst [vmem:[%s1 + $0x350] sm:$0xff] %v505
  %691 = vst [vmem:[%s1 + $0x358] sm:$0xff] %v569
  %692 = vst [vmem:[%s1 + $0x360] sm:$0xff] %v250
  %693 = vst [vmem:[%s1 + $0x368] sm:$0xff] %v314
  %694 = vst [vmem:[%s1 + $0x370] sm:$0xff] %v378
  %695 = vst [vmem:[%s1 + $0x378] sm:$0xff] %v442
  %696 = vst [vmem:[%s1 + $0x380] sm:$0xff] %v506
  %697 = vst [vmem:[%s1 + $0x388] sm:$0xff] %v570
  %698 = vst [vmem:[%s1 + $0x390] sm:$0xff] %v251
  %699 = vst [vmem:[%s1 + $0x398] sm:$0xff] %v315
  %700 = vst [vmem:[%s1 + $0x3a0] sm:$0xff] %v379
  %701 = vst [vmem:[%s1 + $0x3a8] sm:$0xff] %v443
  %702 = vst [vmem:[%s1 + $0x3b0] sm:$0xff] %v507
  %703 = vst [vmem:[%s1 + $0x3b8] sm:$0xff] %v571
  %704 = vst [vmem:[%s1 + $0x3c0] sm:$0xff] %v252
  %705 = vst [vmem:[%s1 + $0x3c8] sm:$0xff] %v316
  %706 = vst [vmem:[%s1 + $0x3d0] sm:$0xff] %v380
  %707 = vst [vmem:[%s1 + $0x3d8] sm:$0xff] %v444
  %708 = vst [vmem:[%s1 + $0x3e0] sm:$0xff] %v508
  %709 = vst [vmem:[%s1 + $0x3e8] sm:$0xff] %v572
  %710 = vst [vmem:[%s1 + $0x3f0] sm:$0xff] %v253
  %711 = vst [vmem:[%s1 + $0x3f8] sm:$0xff] %v317
  %712 = vst [vmem:[%s1 + $0x400] sm:$0xff] %v381
  %713 = vst [vmem:[%s1 + $0x408] sm:$0xff] %v445
  %714 = vst [vmem:[%s1 + $0x410] sm:$0xff] %v509
  %715 = vst [vmem:[%s1 + $0x418] sm:$0xff] %v573
  %716 = vst [vmem:[%s1 + $0x420] sm:$0xff] %v254
  %717 = vst [vmem:[%s1 + $0x428] sm:$0xff] %v318
  %718 = vst [vmem:[%s1 + $0x430] sm:$0xff] %v382
  %719 = vst [vmem:[%s1 + $0x438] sm:$0xff] %v446
  %720 = vst [vmem:[%s1 + $0x440] sm:$0xff] %v510
  %721 = vst [vmem:[%s1 + $0x448] sm:$0xff] %v574
  %722 = vst [vmem:[%s1 + $0x450] sm:$0xff] %v255
  %723 = vst [vmem:[%s1 + $0x458] sm:$0xff] %v319
  %724 = vst [vmem:[%s1 + $0x460] sm:$0xff] %v383
  %725 = vst [vmem:[%s1 + $0x468] sm:$0xff] %v447
  %726 = vst [vmem:[%s1 + $0x470] sm:$0xff] %v511
  %727 = vst [vmem:[%s1 + $0x478] sm:$0xff] %v575
  %728 = vst [vmem:[%s1 + $0x480] sm:$0xf] %v256
  %729 = vst [vmem:[%s1 + $0x488] sm:$0xf] %v320
  %730 = vst [vmem:[%s1 + $0x490] sm:$0xf] %v384
  %731 = vst [vmem:[%s1 + $0x498] sm:$0xf] %v448
  %732 = vst [vmem:[%s1 + $0x4a0] sm:$0xf] %v512
  %733 = vst [vmem:[%s1 + $0x4a8] sm:$0xf] %v576
  // Predicated region
  $region6: #{tpu_custom_call.1} parent=0 // pred_check
    _
  $region7: #{tpu_custom_call.1} parent=0 // pred_check_branch
    %735 = sbr.rel (0) target = $region9
  $region8: #{tpu_custom_call.1} parent=0 // pred_region
    _
  $region9: #{tpu_custom_call.1} parent=0 // pred_fallthru
    _
  // Predicated region
  $region10: #{tpu_custom_call.1} parent=0 // pred_check
    _
  $region11: #{tpu_custom_call.1} parent=0 // pred_check_branch
    %737 = sbr.rel (0) target = $region13
  $region12: #{tpu_custom_call.1} parent=0 // pred_region
    _
  $region13: #{tpu_custom_call.1} parent=0 // pred_fallthru
    _

</llo_original>
